<compile_context>
chip_gen: v6e
topology: v6e:2x2x1
jax: 0.10.0
libtpu: 0.0.40
codegen_flags: <defaults>
</compile_context>

<pallas_src>
import functools

import jax
import jax.numpy as jnp
from jax.experimental import pallas as pl
from jax.experimental.pallas import tpu as pltpu

_LN_EPS = 1e-5


def _channels_proj_kernel(x_ref, w_ref, g_ref, b_ref, o_ref):
    # x_ref: (TV, B, D)   activations for TV vectors
    # w_ref: (TV, D, C)   projection weights (K on sublanes, N on lanes)
    # g_ref: (1, 1, C)    layernorm gamma (f32)
    # b_ref: (TV, 1, C)   layernorm beta + folded per-vector projection bias (f32)
    # o_ref: (TV, B, C)
    x = x_ref[...]
    w = w_ref[...]

    # h[v,b,c] = sum_d x[v,b,d] * w[v,d,c]  -- batched MXU matmul, f32 accumulate.
    h = jax.lax.dot_general(
        x, w,
        dimension_numbers=(((2,), (1,)), ((0,), (0,))),
        preferred_element_type=jnp.float32,
    )                                                       # (TV, B, C) f32

    # LayerNorm over channels (biased variance, eps=1e-5) + affine + folded bias.
    mean = jnp.mean(h, axis=-1, keepdims=True)
    centered = h - mean
    var = jnp.mean(centered * centered, axis=-1, keepdims=True)
    hn = centered * jax.lax.rsqrt(var + _LN_EPS)
    out = hn * g_ref[...] + b_ref[...]
    o_ref[...] = out.astype(o_ref.dtype)


def _choose_tv(vectors, channels, d_latent, itemsize, *,
               budget_bytes=8 << 20, min_steps=2):
    """Vectors per grid step: biggest TV whose weight tile fits the budget,
    while keeping >= min_steps grid steps (so v7x can shard across 2 TCs)."""
    per_v = channels * d_latent * itemsize
    tv = max(1, min(vectors, budget_bytes // per_v)) if per_v <= budget_bytes else 1
    if vectors >= min_steps:
        tv = min(tv, pl.cdiv(vectors, min_steps))
    return int(max(1, tv))


def prepare_channels_proj_params(proj_w, proj_b, ln_g, ln_b, *,
                                 vectors, channels, d_latent,
                                 matmul_dtype=jnp.bfloat16,
                                 weight_tile_bytes=8 << 20):
    """One-time weight prep (call OUTSIDE the per-step jitted path).

    Returns a dict of device arrays + static tiling info consumed by
    channels_proj().  Weights are cast/transposed/padded here exactly once so
    the bandwidth-dominant stream is already bf16 (or chosen dtype) in HBM.
    """
    V, C, D = vectors, channels, d_latent
    itemsize = jnp.dtype(matmul_dtype).itemsize
    tv = _choose_tv(V, C, D, itemsize, budget_bytes=weight_tile_bytes)
    v_pad = int(pl.cdiv(V, tv)) * tv

    # (V, D, C): canonical MXU RHS layout; no per-step transpose in the kernel.
    w_vdc = jnp.transpose(proj_w.reshape(V, C, D), (0, 2, 1)).astype(matmul_dtype)
    # Fold the projection bias into LayerNorm beta (both are post-scale adds).
    bias_v1c = (ln_b[None, :].astype(jnp.float32)
                + proj_b.reshape(V, C).astype(jnp.float32))[:, None, :]   # (V,1,C)
    gamma_11c = ln_g.reshape(1, 1, C).astype(jnp.float32)

    if v_pad != V:
        w_vdc = jnp.pad(w_vdc, ((0, v_pad - V), (0, 0), (0, 0)))
        bias_v1c = jnp.pad(bias_v1c, ((0, v_pad - V), (0, 0), (0, 0)))

    return dict(w_vdc=w_vdc, gamma=gamma_11c, bias=bias_v1c,
                tv=tv, vectors=V)


@functools.partial(jax.jit, static_argnames=("tv", "vectors", "out_dtype"))
def channels_proj(x, w_vdc, gamma, bias, *, tv, vectors, out_dtype=jnp.float32):
    """x: [B, V, D] -> [B, V, C].  Weights must come from prepare_channels_proj_params."""
    B = x.shape[0]
    V_pad, D, C = w_vdc.shape

    # Activations are small vs. the weight stream; cast per call is cheap.
    x = x.astype(w_vdc.dtype)
    # Vector-major layout so each grid step sees a contiguous (TV, B, D) slab.
    x_vbd = jnp.transpose(x, (1, 0, 2))                       # (V, B, D)
    if V_pad != vectors:
        x_vbd = jnp.pad(x_vbd, ((0, V_pad - vectors), (0, 0), (0, 0)))

    # Scoped-VMEM budget from the ACTUAL double-buffered tile sizes (+ headroom).
    in_bytes = jnp.dtype(w_vdc.dtype).itemsize
    out_bytes = jnp.dtype(out_dtype).itemsize
    tile_bytes = 2 * (tv * D * C * in_bytes          # weight tile
                      + tv * B * D * in_bytes        # activation tile
                      + tv * B * C * out_bytes       # output tile
                      + (tv + 1) * C * 4)            # gamma + folded bias tiles
    vmem_limit = int(max(32 << 20, tile_bytes + (8 << 20)))

    out_vbc = pl.pallas_call(
        _channels_proj_kernel,
        out_shape=jax.ShapeDtypeStruct((V_pad, B, C), out_dtype),
        grid=(V_pad // tv,),
        in_specs=[
            pl.BlockSpec((tv, B, D), lambda v: (v, 0, 0)),
            pl.BlockSpec((tv, D, C), lambda v: (v, 0, 0)),
            pl.BlockSpec((1, 1, C), lambda v: (0, 0, 0)),
            pl.BlockSpec((tv, 1, C), lambda v: (v, 0, 0)),
        ],
        out_specs=pl.BlockSpec((tv, B, C), lambda v: (v, 0, 0)),
        compiler_params=pltpu.CompilerParams(
            dimension_semantics=("parallel",),      # shards V chunks across TCs on v7x
            vmem_limit_bytes=vmem_limit),
    )(x_vbd, w_vdc, gamma, bias)

    return jnp.transpose(out_vbc[:vectors], (1, 0, 2))        # (B, V, C)


def _reference(x, proj_w, proj_b, ln_g, ln_b, vectors, channels, d_latent):
    w_vcd = proj_w.reshape(vectors, channels, d_latent)
    b_vc = proj_b.reshape(1, vectors, channels)
    h = jnp.einsum("bvd,vcd->bvc", x, w_vcd)
    mean = jnp.mean(h, axis=-1, keepdims=True)
    var = jnp.mean((h - mean) ** 2, axis=-1, keepdims=True)
    h = (h - mean) * jax.lax.rsqrt(var + _LN_EPS) * ln_g + ln_b
    return h + b_vc


if __name__ == "__main__":
    # Small shapes consistent with the module's forward: x is [B, V, D].
    B, V, C, D = 2, 4, 8, 32

    key = jax.random.PRNGKey(0)
    k_x, k_w, k_b, k_g, k_bt = jax.random.split(key, 5)

    x = jax.random.normal(k_x, (B, V, D), dtype=jnp.float32)
    # nn.Linear(d_latent, vectors*channels): weight [V*C, D], bias [V*C]
    proj_w = jax.random.normal(k_w, (V * C, D), dtype=jnp.float32) * 0.05
    proj_b = jax.random.normal(k_b, (V * C,), dtype=jnp.float32) * 0.05
    # nn.LayerNorm(channels): weight/bias [C] (perturbed from 1/0 for a real test)
    ln_g = 1.0 + 0.1 * jax.random.normal(k_g, (C,), dtype=jnp.float32)
    ln_b = 0.1 * jax.random.normal(k_bt, (C,), dtype=jnp.float32)

    ref = _reference(x, proj_w, proj_b, ln_g, ln_b, V, C, D)

    # f32 MXU operands: tight numerical check.
    p32 = prepare_channels_proj_params(proj_w, proj_b, ln_g, ln_b,
                                       vectors=V, channels=C, d_latent=D,
                                       matmul_dtype=jnp.float32)
    out = channels_proj(x, p32["w_vdc"], p32["gamma"], p32["bias"],
                        tv=p32["tv"], vectors=p32["vectors"])
    out = jax.block_until_ready(out)
    assert out.shape == (B, V, C)
    assert jnp.allclose(out, ref, atol=1e-4, rtol=1e-4), \
        f"max err {jnp.max(jnp.abs(out - ref))}"

    # bf16 weights/activations (default production path for the mem-bound
    # weight stream): loose check against the f32 reference.
    pbf = prepare_channels_proj_params(proj_w, proj_b, ln_g, ln_b,
                                       vectors=V, channels=C, d_latent=D)
    out_bf16 = channels_proj(x, pbf["w_vdc"], pbf["gamma"], pbf["bias"],
                             tv=pbf["tv"], vectors=pbf["vectors"])
    out_bf16 = jax.block_until_ready(out_bf16)
    assert out_bf16.shape == (B, V, C)
    assert jnp.allclose(out_bf16, ref, atol=1e-1, rtol=1e-1), \
        f"bf16 max err {jnp.max(jnp.abs(out_bf16 - ref))}"

    print("KERNEL_OK")
</pallas_src>

<mosaic_0001>
module attributes {stable_mosaic.version = 11 : i64} {
  func.func @_channels_proj_kernel(%arg0: i32, %arg1: memref<2x2x32xf32, #tpu.memory_space<vmem>>, %arg2: memref<2x32x8xf32, #tpu.memory_space<vmem>>, %arg3: memref<1x1x8xf32, #tpu.memory_space<vmem>>, %arg4: memref<2x1x8xf32, #tpu.memory_space<vmem>>, %arg5: memref<2x2x8xf32, #tpu.memory_space<vmem>>) attributes {dimension_semantics = [#tpu.dimension_semantics<parallel>], iteration_bounds = array<i64: 2>, scalar_prefetch = 0 : i64, scratch_operands = 0 : i64, tpu.core_type = #tpu.core_type<tc>, window_params = [{transform_indices = @transform_0, window_bounds = array<i64: 2, 2, 32>}, {transform_indices = @transform_1, window_bounds = array<i64: 2, 32, 8>}, {pipeline_mode = #tpu.pipeline_mode<synchronous>, transform_indices = @transform_2, window_bounds = array<i64: 1, 1, 8>}, {transform_indices = @transform_3, window_bounds = array<i64: 2, 1, 8>}, {transform_indices = @transform_4, window_bounds = array<i64: 2, 2, 8>}]} {
    %c0 = arith.constant 0 : index
    %c0_0 = arith.constant 0 : index
    %c0_1 = arith.constant 0 : index
    %0 = vector.load %arg1[%c0, %c0_0, %c0_1] : memref<2x2x32xf32, #tpu.memory_space<vmem>>, vector<2x2x32xf32>
    %c0_2 = arith.constant 0 : index
    %c0_3 = arith.constant 0 : index
    %c0_4 = arith.constant 0 : index
    %1 = vector.load %arg2[%c0_2, %c0_3, %c0_4] : memref<2x32x8xf32, #tpu.memory_space<vmem>>, vector<2x32x8xf32>
    %cst = arith.constant dense<0.000000e+00> : vector<2x2x8xf32>
    %2 = tpu.matmul %0, %1, %cst {dimension_numbers = #tpu.dot_dimension_numbers<[2], [1], [1], [2], [0, 0, 0, 1, 1, 2], [0], [0]>} : vector<2x2x32xf32>, vector<2x32x8xf32>, vector<2x2x8xf32> -> vector<2x2x8xf32>
    %cst_5 = arith.constant dense<0.000000e+00> : vector<2x2xf32>
    %3 = vector.multi_reduction <add>, %2, %cst_5 [2] : vector<2x2x8xf32> to vector<2x2xf32>
    %4 = vector.shape_cast %3 : vector<2x2xf32> to vector<2x2x1xf32>
    %cst_6 = arith.constant 8.000000e+00 : f32
    %5 = vector.broadcast %cst_6 : f32 to vector<2x2x1xf32>
    %6 = arith.divf %4, %5 : vector<2x2x1xf32>
    %7 = vector.broadcast %6 : vector<2x2x1xf32> to vector<2x2x8xf32>
    %8 = arith.subf %2, %7 : vector<2x2x8xf32>
    %9 = arith.mulf %8, %8 : vector<2x2x8xf32>
    %cst_7 = arith.constant dense<0.000000e+00> : vector<2x2xf32>
    %10 = vector.multi_reduction <add>, %9, %cst_7 [2] : vector<2x2x8xf32> to vector<2x2xf32>
    %11 = vector.shape_cast %10 : vector<2x2xf32> to vector<2x2x1xf32>
    %cst_8 = arith.constant 8.000000e+00 : f32
    %12 = vector.broadcast %cst_8 : f32 to vector<2x2x1xf32>
    %13 = arith.divf %11, %12 : vector<2x2x1xf32>
    %cst_9 = arith.constant 9.99999974E-6 : f32
    %14 = vector.broadcast %cst_9 : f32 to vector<2x2x1xf32>
    %15 = arith.addf %13, %14 : vector<2x2x1xf32>
    %16 = math.rsqrt %15 : vector<2x2x1xf32>
    %17 = vector.broadcast %16 : vector<2x2x1xf32> to vector<2x2x8xf32>
    %18 = arith.mulf %8, %17 : vector<2x2x8xf32>
    %c0_10 = arith.constant 0 : index
    %c0_11 = arith.constant 0 : index
    %c0_12 = arith.constant 0 : index
    %19 = vector.load %arg3[%c0_10, %c0_11, %c0_12] : memref<1x1x8xf32, #tpu.memory_space<vmem>>, vector<1x1x8xf32>
    %20 = vector.broadcast %19 : vector<1x1x8xf32> to vector<2x2x8xf32>
    %21 = arith.mulf %18, %20 : vector<2x2x8xf32>
    %c0_13 = arith.constant 0 : index
    %c0_14 = arith.constant 0 : index
    %c0_15 = arith.constant 0 : index
    %22 = vector.load %arg4[%c0_13, %c0_14, %c0_15] : memref<2x1x8xf32, #tpu.memory_space<vmem>>, vector<2x1x8xf32>
    %23 = vector.broadcast %22 : vector<2x1x8xf32> to vector<2x2x8xf32>
    %24 = arith.addf %21, %23 : vector<2x2x8xf32>
    %c0_16 = arith.constant 0 : index
    %c0_17 = arith.constant 0 : index
    %c0_18 = arith.constant 0 : index
    %25 = vector.load %arg5[%c0_16, %c0_17, %c0_18] : memref<2x2x8xf32, #tpu.memory_space<vmem>>, vector<2x2x8xf32>
    tpu.vector_store %arg5[%c0_16, %c0_17, %c0_18], %24 {strides = array<i32>} : memref<2x2x8xf32, #tpu.memory_space<vmem>>, vector<2x2x8xf32>,
    return
  }
  func.func @transform_0(%arg0: i32) -> (i32, i32, i32) {
    %c0_i32 = arith.constant 0 : i32
    %c0_i32_0 = arith.constant 0 : i32
    %c0_i32_1 = arith.constant 0 : i32
    return %arg0, %c0_i32, %c0_i32_0 : i32, i32, i32
  }
  func.func @transform_1(%arg0: i32) -> (i32, i32, i32) {
    %c0_i32 = arith.constant 0 : i32
    %c0_i32_0 = arith.constant 0 : i32
    %c0_i32_1 = arith.constant 0 : i32
    return %arg0, %c0_i32, %c0_i32_0 : i32, i32, i32
  }
  func.func @transform_2(%arg0: i32) -> (i32, i32, i32) {
    %c0_i32 = arith.constant 0 : i32
    %c0_i32_0 = arith.constant 0 : i32
    %c0_i32_1 = arith.constant 0 : i32
    %c0_i32_2 = arith.constant 0 : i32
    return %c0_i32, %c0_i32_0, %c0_i32_1 : i32, i32, i32
  }
  func.func @transform_3(%arg0: i32) -> (i32, i32, i32) {
    %c0_i32 = arith.constant 0 : i32
    %c0_i32_0 = arith.constant 0 : i32
    %c0_i32_1 = arith.constant 0 : i32
    return %arg0, %c0_i32, %c0_i32_0 : i32, i32, i32
  }
  func.func @transform_4(%arg0: i32) -> (i32, i32, i32) {
    %c0_i32 = arith.constant 0 : i32
    %c0_i32_0 = arith.constant 0 : i32
    %c0_i32_1 = arith.constant 0 : i32
    return %arg0, %c0_i32, %c0_i32_0 : i32, i32, i32
  }
}

</mosaic_0001>

<llo_original>
// kernel: channels_proj.1
$region0: #{channels_proj.1}
  #allocation0 [shape = 'u32[]', space=smem, size = 0x4, offset = 0x4, fixed_abs, tag = 'smem constant byte address 0x4 - core index']
  #allocation1 [shape = 'u32[144,128]{1,0:T(1,128)}', space=vmem, size = 0x12000, scoped, tag = 'internal scratch']
  %s0 = inlined_call_operand.vmem [shape: f32[4,2,32], index: 0, kind: input, shape index: {}]
  %s1 = inlined_call_operand.vmem [shape: f32[4,32,8], index: 1, kind: input, shape index: {}]
  %s2 = inlined_call_operand.vmem [shape: f32[1,1,8], index: 2, kind: input, shape index: {}]
  %s3 = inlined_call_operand.vmem [shape: f32[4,1,8], index: 3, kind: input, shape index: {}]
  %s4 = inlined_call_operand.vmem [shape: f32[4,2,8], index: 4, kind: output, shape index: {}]
  %s5 = sld [smem:[#allocation0]]
  $region49: #{channels_proj.1} parent=0
    _
  %s7 = ssub.s32 1, %s5
  %s8 = scalar_select 0, %s7, %s5
  loop: start=0, step=1, limit=4
  $region2: #{channels_proj.1} parent=0 // loop_pre_header
    _
  $region3: #{channels_proj.1} parent=0 // loop_header
    %s10 = sphi 0, %s14
    %p11 = scmp.ge.s32.totalorder %s10, 4
    %s20 = sphi 0, %s22
    %s23 = sphi 0, %s20
    %s24 = sphi 0, %s23
    %s40 = sphi 0, %s24
    %s46 = sphi 0, %s48
    %s49 = sphi 0, %s46
    %s50 = sphi 0, %s49
    %s66 = sphi 0, %s50
    %s70 = sphi 0, %s70
    %s72 = sphi 0, %s70
    %s73 = sphi 0, %s72
    %s87 = sphi 0, %s73
    %s93 = sphi 0, %s95
    %s96 = sphi 0, %s93
    %s97 = sphi 0, %s96
    %s113 = sphi 0, %s97
    %s119 = sphi 0, %s121
    %s122 = sphi 0, %s119
    %s123 = sphi 0, %s122
    %s139 = sphi 0, %s123
  $region4: #{channels_proj.1} parent=0 // loop_header_branch
    %13 = sbr.rel (%p11) target = $region8
  $region5: #{channels_proj.1} parent=0 // loop_body
    %s15 = ssub.s32 %s10, 1
    %s16 = ssub.s32 %s10, 2
    %s17 = sadd.s32 %s10, 1
    %s18 = ssub.s32 %s10, %s17
    %p19 = scmp.eq.s32.totalorder %s18, 0
    %s21 = sadd.s32 %s20, 1
    %s22 = scalar_select %p19, %s20, %s21
    %p25 = pneg %p19
    %p26 = scmp.eq.s32.totalorder %s10, 1
    %p27 = por %p25, %p26
    %p28 = scmp.ne.s32.totalorder %s20, %s23
    %p29 = scmp.eq.s32.totalorder %s10, 0
    %p30 = por %p28, %p29
    %p31 = scmp.ne.s32.totalorder %s20, %s23
    %p32 = scmp.eq.s32.totalorder %s15, 1
    %p33 = por %p31, %p32
    %p34 = scmp.ne.s32.totalorder %s23, %s24
    %p35 = scmp.eq.s32.totalorder %s15, 0
    %p36 = por %p34, %p35
    %p37 = scmp.ne.s32.totalorder %s23, %s24
    %p38 = scmp.eq.s32.totalorder %s16, 1
    %p39 = por %p37, %p38
    %p41 = scmp.ne.s32.totalorder %s24, %s40
    %p42 = scmp.eq.s32.totalorder %s16, 0
    %p43 = por %p41, %p42
    %s44 = ssub.s32 %s10, %s17
    %p45 = scmp.eq.s32.totalorder %s44, 0
    %s47 = sadd.s32 %s46, 1
    %s48 = scalar_select %p45, %s46, %s47
    %p51 = pneg %p45
    %p52 = scmp.eq.s32.totalorder %s10, 1
    %p53 = por %p51, %p52
    %p54 = scmp.ne.s32.totalorder %s46, %s49
    %p55 = scmp.eq.s32.totalorder %s10, 0
    %p56 = por %p54, %p55
    %p57 = scmp.ne.s32.totalorder %s46, %s49
    %p58 = scmp.eq.s32.totalorder %s15, 1
    %p59 = por %p57, %p58
    %p60 = scmp.ne.s32.totalorder %s49, %s50
    %p61 = scmp.eq.s32.totalorder %s15, 0
    %p62 = por %p60, %p61
    %p63 = scmp.ne.s32.totalorder %s49, %s50
    %p64 = scmp.eq.s32.totalorder %s16, 1
    %p65 = por %p63, %p64
    %p67 = scmp.ne.s32.totalorder %s50, %s66
    %p68 = scmp.eq.s32.totalorder %s16, 0
    %p69 = por %p67, %p68
    %s71 = sadd.s32 %s70, 1
    %p74 = scmp.eq.s32.totalorder %s10, 1
    %p75 = scmp.ne.s32.totalorder %s70, %s72
    %p76 = scmp.eq.s32.totalorder %s10, 0
    %p77 = por %p75, %p76
    %p78 = scmp.ne.s32.totalorder %s70, %s72
    %p79 = scmp.eq.s32.totalorder %s15, 1
    %p80 = por %p78, %p79
    %p81 = scmp.ne.s32.totalorder %s72, %s73
    %p82 = scmp.eq.s32.totalorder %s15, 0
    %p83 = por %p81, %p82
    %p84 = scmp.ne.s32.totalorder %s72, %s73
    %p85 = scmp.eq.s32.totalorder %s16, 1
    %p86 = por %p84, %p85
    %p88 = scmp.ne.s32.totalorder %s73, %s87
    %p89 = scmp.eq.s32.totalorder %s16, 0
    %p90 = por %p88, %p89
    %s91 = ssub.s32 %s10, %s17
    %p92 = scmp.eq.s32.totalorder %s91, 0
    %s94 = sadd.s32 %s93, 1
    %s95 = scalar_select %p92, %s93, %s94
    %p98 = pneg %p92
    %p99 = scmp.eq.s32.totalorder %s10, 1
    %p100 = por %p98, %p99
    %p101 = scmp.ne.s32.totalorder %s93, %s96
    %p102 = scmp.eq.s32.totalorder %s10, 0
    %p103 = por %p101, %p102
    %p104 = scmp.ne.s32.totalorder %s93, %s96
    %p105 = scmp.eq.s32.totalorder %s15, 1
    %p106 = por %p104, %p105
    %p107 = scmp.ne.s32.totalorder %s96, %s97
    %p108 = scmp.eq.s32.totalorder %s15, 0
    %p109 = por %p107, %p108
    %p110 = scmp.ne.s32.totalorder %s96, %s97
    %p111 = scmp.eq.s32.totalorder %s16, 1
    %p112 = por %p110, %p111
    %p114 = scmp.ne.s32.totalorder %s97, %s113
    %p115 = scmp.eq.s32.totalorder %s16, 0
    %p116 = por %p114, %p115
    %s117 = ssub.s32 %s10, %s17
    %p118 = scmp.eq.s32.totalorder %s117, 0
    %s120 = sadd.s32 %s119, 1
    %s121 = scalar_select %p118, %s119, %s120
    %p124 = pneg %p118
    %p125 = scmp.eq.s32.totalorder %s10, 1
    %p126 = por %p124, %p125
    %p127 = scmp.ne.s32.totalorder %s119, %s122
    %p128 = scmp.eq.s32.totalorder %s10, 0
    %p129 = por %p127, %p128
    %p130 = scmp.ne.s32.totalorder %s119, %s122
    %p131 = scmp.eq.s32.totalorder %s15, 1
    %p132 = por %p130, %p131
    %p133 = scmp.ne.s32.totalorder %s122, %s123
    %p134 = scmp.eq.s32.totalorder %s15, 0
    %p135 = por %p133, %p134
    %p136 = scmp.ne.s32.totalorder %s122, %s123
    %p137 = scmp.eq.s32.totalorder %s16, 1
    %p138 = por %p136, %p137
    %p140 = scmp.ne.s32.totalorder %s123, %s139
    %p141 = scmp.eq.s32.totalorder %s16, 0
    %p142 = por %p140, %p141
    %p143 = scmp.le.s32.totalorder 1, %s10
    %p144 = scmp.lt.s32.totalorder %s10, 3
    %p145 = pnand %p143, %p144
    %p146 = pneg %p145
    // Predicated region
    $region9: #{channels_proj.1} parent=5 // pred_check
      _
    $region10: #{channels_proj.1} parent=5 // pred_check_branch
      %148 = sbr.rel (%p145) target = $region12
    $region11: #{channels_proj.1} parent=5 // pred_region
      %s149 = ssub.s32 %s10, 1
      // Predicated region
      $region13: #{channels_proj.1} parent=11 // pred_check
        %p150 = pneg %p83
      $region14: #{channels_proj.1} parent=11 // pred_check_branch
        %152 = sbr.rel (%p150) target = $region16
      $region15: #{channels_proj.1} parent=11 // pred_region
        _
      $region16: #{channels_proj.1} parent=11 // pred_fallthru
        _
    $region12: #{channels_proj.1} parent=5 // pred_fallthru
      _
    %p153 = scmp.lt.s32.totalorder %s10, 2
    // Predicated region
    $region17: #{channels_proj.1} parent=5 // pred_check
      %p154 = pneg %p153
    $region18: #{channels_proj.1} parent=5 // pred_check_branch
      %156 = sbr.rel (%p154) target = $region20
    $region19: #{channels_proj.1} parent=5 // pred_region
      // Predicated region
      $region21: #{channels_proj.1} parent=19 // pred_check
        %p157 = pneg %p30
      $region22: #{channels_proj.1} parent=19 // pred_check_branch
        %159 = sbr.rel (%p157) target = $region24
      $region23: #{channels_proj.1} parent=19 // pred_region
        %s160 = smul.u32 2, %s10
        %p161 = scmp.lt.s32.totalorder %s160, 3
        %s162 = scalar_select %p161, %s160, 3
        %s163 = smul.addr %s162, 2
        %s164 = scalar_lea.vmem %s0, %s163
        %s165 = smul.u32 2, %s10
      $region24: #{channels_proj.1} parent=19 // pred_fallthru
        _
      // Predicated region
      $region25: #{channels_proj.1} parent=19 // pred_check
        %p166 = pneg %p56
      $region26: #{channels_proj.1} parent=19 // pred_check_branch
        %168 = sbr.rel (%p166) target = $region28
      $region27: #{channels_proj.1} parent=19 // pred_region
        %s169 = smul.u32 2, %s10
        %p170 = scmp.lt.s32.totalorder %s169, 3
        %s171 = scalar_select %p170, %s169, 3
        %s172 = smul.addr %s171, 4
        %s173 = smul.addr %s172, 8
        %s174 = scalar_lea.vmem %s1, %s173
        %s175 = smul.u32 2, %s10
      $region28: #{channels_proj.1} parent=19 // pred_fallthru
        _
      // Predicated region
      $region29: #{channels_proj.1} parent=19 // pred_check
        %p176 = pneg %p103
      $region30: #{channels_proj.1} parent=19 // pred_check_branch
        %178 = sbr.rel (%p176) target = $region32
      $region31: #{channels_proj.1} parent=19 // pred_region
        %s179 = smul.u32 2, %s10
        %p180 = scmp.lt.s32.totalorder %s179, 3
        %s181 = scalar_select %p180, %s179, 3
        %s182 = scalar_lea.vmem %s3, %s181
        %s183 = smul.u32 2, %s10
      $region32: #{channels_proj.1} parent=19 // pred_fallthru
        _
    $region20: #{channels_proj.1} parent=5 // pred_fallthru
      _
    %p184 = scmp.le.s32.totalorder 1, %s10
    %p185 = scmp.lt.s32.totalorder %s10, 3
    %p186 = pnand %p184, %p185
    %p187 = pneg %p186
    // Predicated region
    $region33: #{channels_proj.1} parent=5 // pred_check
      _
    $region34: #{channels_proj.1} parent=5 // pred_check_branch
      %189 = sbr.rel (%p186) target = $region36
    $region35: #{channels_proj.1} parent=5 // pred_region
      %s190 = ssub.s32 %s10, 1
      %s191 = smul.u32 2, %s15
      %p192 = scmp.lt.s32.totalorder %s191, 3
      %s193 = scalar_select %p192, %s191, 3
      %s194 = smul.addr %s193, 2
      %s195 = scalar_lea.vmem %s0, %s194
      %p196 = pneg %p36
      %p197 = pneg %p33
      %s198 = smul.u32 2, %s15
      %p199 = scmp.lt.s32.totalorder %s198, 3
      %s200 = scalar_select %p199, %s198, 3
      %s201 = smul.addr %s200, 4
      %s202 = smul.addr %s201, 8
      %s203 = scalar_lea.vmem %s1, %s202
      %p204 = pneg %p62
      %p205 = pneg %p59
      %p206 = pneg %p83
      %p207 = pneg %p80
      %s208 = smul.u32 2, %s15
      %p209 = scmp.lt.s32.totalorder %s208, 3
      %s210 = scalar_select %p209, %s208, 3
      %s211 = scalar_lea.vmem %s3, %s210
      %p212 = pneg %p109
      %p213 = pneg %p106
      %p214 = pneg %p135
      %p215 = pneg %p132
      %s216 = smul.u32 2, %s15
      %p217 = scmp.lt.s32.totalorder %s216, 3
      %s218 = scalar_select %p217, %s216, 3
      %s219 = smul.addr %s218, 2
      %s220 = scalar_lea.vmem %s4, %s219
      %s221 = smul.u32 2, %s15
      %p222 = scmp.lt.s32.totalorder %s221, 3
      %s223 = scalar_select %p222, %s221, 3
      %s224 = smul.addr %s223, 2
      %s225 = scalar_lea.vmem %s0, %s224
      %s226 = smul.u32 2, %s15
      %s227 = smul.u32 2, %s15
      %p228 = scmp.lt.s32.totalorder %s227, 3
      %s229 = scalar_select %p228, %s227, 3
      %s230 = smul.addr %s229, 4
      %s231 = smul.addr %s230, 8
      %s232 = scalar_lea.vmem %s1, %s231
      %s233 = smul.u32 2, %s15
      %s234 = smul.u32 2, %s15
      %p235 = scmp.lt.s32.totalorder %s234, 3
      %s236 = scalar_select %p235, %s234, 3
      %s237 = scalar_lea.vmem %s3, %s236
      %s238 = smul.u32 2, %s15
      %s239 = smul.u32 2, %s15
      %p240 = scmp.lt.s32.totalorder %s239, 3
      %s241 = scalar_select %p240, %s239, 3
      %s242 = smul.addr %s241, 2
      %s243 = scalar_lea.vmem %s4, %s242
      %s244 = smul.u32 2, %s15
      %v245 = vld [vmem:[%s225] sm:$0x3]
      %v246 = vld [vmem:[%s225 + $0x2] sm:$0x3]
      %v247 = vld [vmem:[%s232] sm:$0xff]
      %v248 = vld [vmem:[%s232 + $0x8] sm:$0xff]
      %v249 = vld [vmem:[%s232 + $0x10] sm:$0xff]
      %v250 = vld [vmem:[%s232 + $0x18] sm:$0xff]
      %v251 = vld [vmem:[%s232 + $0x20] sm:$0xff]
      %v252 = vld [vmem:[%s232 + $0x28] sm:$0xff]
      %v253 = vld [vmem:[%s232 + $0x30] sm:$0xff]
      %v254 = vld [vmem:[%s232 + $0x38] sm:$0xff]
      %vm255 = vcmask 261120
      %v257 = vsel %vm255, %v245, 0
      %259 = vmatprep.subr.mxu0 0.0
      %260 = vmatpush1.msra.mxu0 0.0
      %261 = vmatprep.subr.mxu0 0.0
      %262 = vmatpush1.msra.mxu0 0.0
      %263 = vmatprep.subr.mxu0 0.0
      %264 = vmatpush1.msra.mxu0 0.0
      %265 = vmatprep.subr.mxu0 0.0
      %266 = vmatpush1.msra.mxu0 0.0
      %267 = vmatprep.subr.mxu0 0.0
      %268 = vmatpush1.msra.mxu0 0.0
      %269 = vmatprep.subr.mxu0 0.0
      %270 = vmatpush1.msra.mxu0 0.0
      %271 = vmatprep.subr.mxu0 0.0
      %272 = vmatpush1.msra.mxu0 0.0
      %273 = vmatprep.subr.mxu0 0.0
      %274 = vmatpush1.msra.mxu0 0.0
      %275 = vmatprep.subr.mxu0 0.0
      %276 = vmatpush1.msra.mxu0 0.0
      %277 = vmatprep.subr.mxu0 0.0
      %278 = vmatpush1.msra.mxu0 0.0
      %279 = vmatprep.subr.mxu0 0.0
      %280 = vmatpush1.msra.mxu0 0.0
      %281 = vmatprep.subr.mxu0 0.0
      %282 = vmatpush1.msra.mxu0 0.0
      %283 = vmatprep.subr.mxu0 0.0
      %284 = vmatpush1.msra.mxu0 %v250
      %285 = vmatprep.subr.mxu0 0.0
      %286 = vmatpush1.msra.mxu0 %v249
      %287 = vmatprep.subr.mxu0 0.0
      %288 = vmatpush1.msra.mxu0 %v248
      %289 = vmatprep.subr.mxu0 0.0
      %290 = vmatpush1.msra.mxu0 %v247
      %291 = vmatprep.subr.mxu0 0.0
      %292 = vmatpush2.msra.mxu0 0.0
      %293 = vmatprep.subr.mxu0 0.0
      %294 = vmatpush2.msra.mxu0 0.0
      %295 = vmatprep.subr.mxu0 0.0
      %296 = vmatpush2.msra.mxu0 0.0
      %297 = vmatprep.subr.mxu0 0.0
      %298 = vmatpush2.msra.mxu0 0.0
      %299 = vmatprep.subr.mxu0 0.0
      %300 = vmatpush2.msra.mxu0 0.0
      %301 = vmatprep.subr.mxu0 0.0
      %302 = vmatpush2.msra.mxu0 0.0
      %303 = vmatprep.subr.mxu0 0.0
      %304 = vmatpush2.msra.mxu0 0.0
      %305 = vmatprep.subr.mxu0 0.0
      %306 = vmatpush2.msra.mxu0 0.0
      %307 = vmatprep.subr.mxu0 0.0
      %308 = vmatpush2.msra.mxu0 0.0
      %309 = vmatprep.subr.mxu0 0.0
      %310 = vmatpush2.msra.mxu0 0.0
      %311 = vmatprep.subr.mxu0 0.0
      %312 = vmatpush2.msra.mxu0 0.0
      %313 = vmatprep.subr.mxu0 0.0
      %314 = vmatpush2.msra.mxu0 0.0
      %315 = vmatprep.subr.mxu0 0.0
      %316 = vmatpush2.msra.mxu0 0.0
      %317 = vmatprep.subr.mxu0 0.0
      %318 = vmatpush2.msra.mxu0 0.0
      %319 = vmatprep.subr.mxu0 0.0
      %320 = vmatpush2.msra.mxu0 0.0
      %321 = vmatprep.subr.mxu0 0.0
      %322 = vmatpush2.msra.mxu0 0.0
      %323 = vmatprep.mubr.f32.mxu0 0.0
      %324 = vmatmul.mubr.f32.gmra.mxu0 %v257
      %v325 = vpop.f32.mrf.mxu0
      %v326 = vadd.f32 0.0, %v325
      %v327 = vpop.f32.mrf.mxu0
      %328 = vdwg.mxu0
      %v330 = vsel %vm255, %v246, 0
      %332 = vmatprep.subr.mxu0 0.0
      %333 = vmatpush1.msra.mxu0 0.0
      %334 = vmatprep.subr.mxu0 0.0
      %335 = vmatpush1.msra.mxu0 0.0
      %336 = vmatprep.subr.mxu0 0.0
      %337 = vmatpush1.msra.mxu0 0.0
      %338 = vmatprep.subr.mxu0 0.0
      %339 = vmatpush1.msra.mxu0 0.0
      %340 = vmatprep.subr.mxu0 0.0
      %341 = vmatpush1.msra.mxu0 0.0
      %342 = vmatprep.subr.mxu0 0.0
      %343 = vmatpush1.msra.mxu0 0.0
      %344 = vmatprep.subr.mxu0 0.0
      %345 = vmatpush1.msra.mxu0 0.0
      %346 = vmatprep.subr.mxu0 0.0
      %347 = vmatpush1.msra.mxu0 0.0
      %348 = vmatprep.subr.mxu0 0.0
      %349 = vmatpush1.msra.mxu0 0.0
      %350 = vmatprep.subr.mxu0 0.0
      %351 = vmatpush1.msra.mxu0 0.0
      %352 = vmatprep.subr.mxu0 0.0
      %353 = vmatpush1.msra.mxu0 0.0
      %354 = vmatprep.subr.mxu0 0.0
      %355 = vmatpush1.msra.mxu0 0.0
      %356 = vmatprep.subr.mxu0 0.0
      %357 = vmatpush1.msra.mxu0 %v254
      %358 = vmatprep.subr.mxu0 0.0
      %359 = vmatpush1.msra.mxu0 %v253
      %360 = vmatprep.subr.mxu0 0.0
      %361 = vmatpush1.msra.mxu0 %v252
      %362 = vmatprep.subr.mxu0 0.0
      %363 = vmatpush1.msra.mxu0 %v251
      %364 = vmatprep.subr.mxu0 0.0
      %365 = vmatpush2.msra.mxu0 0.0
      %366 = vmatprep.subr.mxu0 0.0
      %367 = vmatpush2.msra.mxu0 0.0
      %368 = vmatprep.subr.mxu0 0.0
      %369 = vmatpush2.msra.mxu0 0.0
      %370 = vmatprep.subr.mxu0 0.0
      %371 = vmatpush2.msra.mxu0 0.0
      %372 = vmatprep.subr.mxu0 0.0
      %373 = vmatpush2.msra.mxu0 0.0
      %374 = vmatprep.subr.mxu0 0.0
      %375 = vmatpush2.msra.mxu0 0.0
      %376 = vmatprep.subr.mxu0 0.0
      %377 = vmatpush2.msra.mxu0 0.0
      %378 = vmatprep.subr.mxu0 0.0
      %379 = vmatpush2.msra.mxu0 0.0
      %380 = vmatprep.subr.mxu0 0.0
      %381 = vmatpush2.msra.mxu0 0.0
      %382 = vmatprep.subr.mxu0 0.0
      %383 = vmatpush2.msra.mxu0 0.0
      %384 = vmatprep.subr.mxu0 0.0
      %385 = vmatpush2.msra.mxu0 0.0
      %386 = vmatprep.subr.mxu0 0.0
      %387 = vmatpush2.msra.mxu0 0.0
      %388 = vmatprep.subr.mxu0 0.0
      %389 = vmatpush2.msra.mxu0 0.0
      %390 = vmatprep.subr.mxu0 0.0
      %391 = vmatpush2.msra.mxu0 0.0
      %392 = vmatprep.subr.mxu0 0.0
      %393 = vmatpush2.msra.mxu0 0.0
      %394 = vmatprep.subr.mxu0 0.0
      %395 = vmatpush2.msra.mxu0 0.0
      %396 = vmatprep.mubr.f32.mxu0 0.0
      %397 = vmatmul.mubr.f32.gmra.mxu0 %v330
      %v398 = vpop.f32.mrf.mxu0
      %v399 = vadd.f32 0.0, %v398
      %v400 = vpop.f32.mrf.mxu0
      %401 = vdwg.mxu0
      %vm402 = vcmask 58368
      %v403 = vsel %vm402, %v326, 0.0
      %404 = vadd.xlane.f32.xlu0 %v403
      %v405 = vpop.xlane.xlu0 %404
      %v406 = vsel %vm402, %v399, 0.0
      %407 = vadd.xlane.f32.xlu0 %v406
      %v408 = vpop.xlane.xlu0 %407
      %v409 = vrcp.pop 8.0
      %v410 = vmul.f32 %v405, %v409
      %v411 = vmul.f32 %v408, %v409
      %v412 = vsub.f32 %v326, %v410
      %v413 = vsub.f32 %v399, %v411
      %v414 = vmul.f32 %v412, %v412
      %v415 = vmul.f32 %v413, %v413
      %v416 = vsel %vm402, %v414, 0.0
      %417 = vadd.xlane.f32.xlu0 %v416
      %v418 = vpop.xlane.xlu0 %417
      %v419 = vsel %vm402, %v415, 0.0
      %420 = vadd.xlane.f32.xlu0 %v419
      %v421 = vpop.xlane.xlu0 %420
      %v422 = vmul.f32 %v418, %v409
      %v423 = vmul.f32 %v421, %v409
      %v424 = vadd.f32 %v422, 1e-05
      %v425 = vadd.f32 %v423, 1e-05
      %v426 = vrsqrt.pop %v424
      %v427 = vrsqrt.pop %v425
      %v428 = vmul.f32 %v412, %v426
      %v429 = vmul.f32 %v413, %v427
      %v430 = vld [vmem:[%s2] sm:$0x1]
      %v432 = vlaneseq
      %v433 = vshrl.u32 %v432, 7
      %v434 = vsub.s32 0, %v433
      %v435 = vrot.slane %v430, %v434
      %v437 = vmul.f32 %v428, %v435
      %v438 = vmul.f32 %v429, %v435
      %v439 = vld [vmem:[%s237] sm:$0x1]
      %v440 = vld [vmem:[%s237 + $0x1] sm:$0x1]
      %v443 = vlaneseq
      %v444 = vshrl.u32 %v443, 7
      %v445 = vsub.s32 0, %v444
      %v446 = vrot.slane %v439, %v445
      %v447 = vlaneseq
      %v448 = vshrl.u32 %v447, 7
      %v449 = vsub.s32 0, %v448
      %v450 = vrot.slane %v440, %v449
      %v453 = vadd.f32 %v437, %v446
      %v454 = vadd.f32 %v438, %v450
      %455 = vst.msk [vmem:[%s243] sm:$0x3] %vm402, %v453
      %456 = vst.msk [vmem:[%s243 + $0x2] sm:$0x3] %vm402, %v454
      %s457 = smul.u32 2, %s15
      %p458 = scmp.lt.s32.totalorder %s457, 3
      %s459 = scalar_select %p458, %s457, 3
      %s460 = smul.addr %s459, 2
      %s461 = scalar_lea.vmem %s4, %s460
      // Predicated region
      $region37: #{channels_proj.1} parent=35 // pred_check
        %p462 = pneg %p132
      $region38: #{channels_proj.1} parent=35 // pred_check_branch
        %464 = sbr.rel (%p462) target = $region40
      $region39: #{channels_proj.1} parent=35 // pred_region
        %s465 = smul.u32 2, %s15
      $region40: #{channels_proj.1} parent=35 // pred_fallthru
        _
    $region36: #{channels_proj.1} parent=5 // pred_fallthru
      _
    %p466 = scmp.le.s32.totalorder 2, %s10
    // Predicated region
    $region41: #{channels_proj.1} parent=5 // pred_check
      %p467 = pneg %p466
    $region42: #{channels_proj.1} parent=5 // pred_check_branch
      %469 = sbr.rel (%p467) target = $region44
    $region43: #{channels_proj.1} parent=5 // pred_region
      %s470 = ssub.s32 %s10, 2
      // Predicated region
      $region45: #{channels_proj.1} parent=43 // pred_check
        %p471 = pneg %p138
      $region46: #{channels_proj.1} parent=43 // pred_check_branch
        %473 = sbr.rel (%p471) target = $region48
      $region47: #{channels_proj.1} parent=43 // pred_region
        %s474 = smul.u32 2, %s16
        %p475 = scmp.lt.s32.totalorder %s474, 3
        %s476 = scalar_select %p475, %s474, 3
        %s477 = smul.addr %s476, 2
        %s478 = scalar_lea.vmem %s4, %s477
      $region48: #{channels_proj.1} parent=43 // pred_fallthru
        _
    $region44: #{channels_proj.1} parent=5 // pred_fallthru
      _
  $region6: #{channels_proj.1} parent=0 // loop_footer
    %s14 = sadd.s32 1, %s10
  $region7: #{channels_proj.1} parent=0 // loop_footer_branch
    %9 = sbr.rel target = $region3
  $region8: #{channels_proj.1} parent=0 // loop_exit
    _

</llo_original>
